<compile_context>
chip_gen: v7x
topology: tpu7x:2x2x1
jax: 0.10.0
libtpu: 0.0.40
codegen_flags: <defaults>
</compile_context>

<pallas_src>
import jax
import jax.numpy as jnp
from jax.experimental import pallas as pl
from jax.experimental.pallas import tpu as pltpu


BN_EPS = 1e-5


def _agg_kernel(a_ref, pool_ref, prm_ref, w2_ref, out_ref):
    # a:    (N, N)  bf16  GCN-normalized adjacency A_hat
    # pool: (B, N)  bf16  global_mean_pool matrix (rows sum to 1)
    # prm:  (8, P)  f32   row0 = w1 folded with BN scale, row1 = folded bias,
    #                     row2[:E] = b2, row3[:N] = x (single input channel)
    # w2:   (H, E)  bf16
    n = a_ref.shape[0]
    hidden = w2_ref.shape[0]
    emb = out_ref.shape[1]

    a = a_ref[...]                        # (N, N) bf16
    w1f = prm_ref[0:1, :hidden]           # (1, H) f32
    b1f = prm_ref[1:2, :hidden]           # (1, H) f32
    b2 = prm_ref[2:3, :emb]               # (1, E) f32
    x_row = prm_ref[3:4, :n]              # (1, N) f32

    # --- GCNConv 1 (+ folded BatchNorm) + ReLU ---
    # A @ (x * w1) == (A @ x) * w1 ; A @ x done as VPU broadcast-multiply + lane reduction
    # (bf16 * f32 promotes to f32, so no bf16 VPU math -> v5e-safe).
    ax = jnp.sum(a * x_row, axis=-1, keepdims=True)          # (N, 1) f32
    h = jnp.maximum(ax * w1f + b1f, 0.0)                      # (N, H) f32
    # Dropout(p=0.2): identity in eval mode.

    # --- GCNConv 2 + global_mean_pool, pool-first: out = ((pool @ A) @ H) @ W2 + b2 ---
    pa = jnp.dot(pool_ref[...], a, preferred_element_type=jnp.float32)         # (B, N)
    pooled = jnp.dot(pa.astype(jnp.bfloat16), h.astype(jnp.bfloat16),
                     preferred_element_type=jnp.float32)                        # (B, H)
    out_ref[...] = jnp.dot(pooled.astype(jnp.bfloat16), w2_ref[...],
                           preferred_element_type=jnp.float32) + b2             # (B, E)


def aggregation_network_forward(x, a_hat, pool, params):
    """Fused AggregationNetwork forward (eval mode).

    Note: hoisting b2 past the pool assumes every pool row sums to 1 (no empty graphs).
    """
    hidden = params["w1"].shape[1]
    emb = params["w2"].shape[1]
    n_graphs, n_nodes = pool.shape

    # Fold eval-mode BatchNorm into the first conv's weight/bias.
    inv_std = 1.0 / jnp.sqrt(params["var"] + BN_EPS)                 # (1, H)
    scale = params["gamma"] * inv_std                                # (1, H)
    w1f = params["w1"] * scale                                       # (1, H)  (conv1 in_dim == 1)
    b1f = (params["b1"] - params["mean"]) * scale + params["beta"]   # (1, H)

    # Pack all row-vector params AND x into a single (8, P) f32 operand (one padded VMEM tile).
    pw = max(hidden, n_nodes, emb)
    packed = jnp.zeros((8, pw), jnp.float32)
    packed = packed.at[0, :hidden].set(w1f[0])
    packed = packed.at[1, :hidden].set(b1f[0])
    packed = packed.at[2, :emb].set(params["b2"][0])
    packed = packed.at[3, :n_nodes].set(x[:, 0])

    # bf16 MXU operands (halves A_hat's HBM/VMEM bytes; f32 accumulate in-kernel).
    a_bf = a_hat.astype(jnp.bfloat16)
    pool_bf = pool.astype(jnp.bfloat16)
    w2_bf = params["w2"].astype(jnp.bfloat16)

    args = (a_bf, pool_bf, packed, w2_bf)
    return pl.pallas_call(
        _agg_kernel,
        out_shape=jax.ShapeDtypeStruct((n_graphs, emb), jnp.float32),
        in_specs=[pl.BlockSpec(memory_space=pltpu.MemorySpace.VMEM)] * len(args),
        out_specs=pl.BlockSpec(memory_space=pltpu.MemorySpace.VMEM),
    )(*args)


# ---------------------------------------------------------------------------
# Plain-JAX glue: graph densification + parameter setup
# ---------------------------------------------------------------------------

def build_normalized_adjacency(edge_index, edge_weight, num_nodes):
    """Dense GCN normalization: A_hat = D^{-1/2} (A + I) D^{-1/2},
    with A[dst, src] = edge_weight (message flow source -> target)."""
    src, dst = edge_index[0], edge_index[1]
    a = jnp.zeros((num_nodes, num_nodes), jnp.float32)
    a = a.at[dst, src].add(edge_weight)
    a = a + jnp.eye(num_nodes, dtype=jnp.float32)       # self-loops, fill_value=1.0
    deg = a.sum(axis=1)
    d_inv_sqrt = jnp.where(deg > 0, 1.0 / jnp.sqrt(deg), 0.0)
    return d_inv_sqrt[:, None] * a * d_inv_sqrt[None, :]


def build_pooling_matrix(batch, num_graphs):
    """(B, N) matrix with P[b, n] = 1/|graph b| if batch[n] == b (global_mean_pool)."""
    one_hot = (batch[None, :] == jnp.arange(num_graphs)[:, None]).astype(jnp.float32)
    counts = jnp.maximum(one_hot.sum(axis=1, keepdims=True), 1.0)
    return one_hot / counts


def glorot(key, shape):
    fan_in, fan_out = shape
    limit = jnp.sqrt(6.0 / (fan_in + fan_out))
    return jax.random.uniform(key, shape, jnp.float32, -limit, limit)


def init_params(key, hidden_dim, embedding_dim):
    k1, k2 = jax.random.split(key)
    return {
        # GCNConv(1, hidden_dim): glorot weight, zero bias
        "w1": glorot(k1, (1, hidden_dim)),
        "b1": jnp.zeros((1, hidden_dim), jnp.float32),
        # BatchNorm1d(hidden_dim) PyTorch defaults (running stats)
        "gamma": jnp.ones((1, hidden_dim), jnp.float32),
        "beta": jnp.zeros((1, hidden_dim), jnp.float32),
        "mean": jnp.zeros((1, hidden_dim), jnp.float32),
        "var": jnp.ones((1, hidden_dim), jnp.float32),
        # GCNConv(hidden_dim, embedding_dim)
        "w2": glorot(k2, (hidden_dim, embedding_dim)),
        "b2": jnp.zeros((1, embedding_dim), jnp.float32),
    }


def reference_forward(x, a_hat, pool, params):
    """Un-folded pure-f32 reference (matches the original module in eval mode)."""
    h = a_hat @ (x @ params["w1"]) + params["b1"]
    h = (h - params["mean"]) / jnp.sqrt(params["var"] + BN_EPS) * params["gamma"] + params["beta"]
    h = jnp.maximum(h, 0.0)
    z = a_hat @ (h @ params["w2"]) + params["b2"]
    return pool @ z


if __name__ == "__main__":
    key = jax.random.PRNGKey(0)
    k_x, k_w, k_ew = jax.random.split(key, 3)

    num_nodes = 16          # 2 graphs of 8 nodes each
    num_graphs = 2
    hidden_dim = 32
    embedding_dim = 2

    # Node features: (N, 1) — GCNConv(1, hidden_dim) implies a single input channel.
    x = jax.random.normal(k_x, (num_nodes, 1), jnp.float32)

    # Deterministic edge_index: bidirectional ring inside each graph of 8 nodes.
    src_list, dst_list = [], []
    for g in range(num_graphs):
        base = g * 8
        for i in range(8):
            a, b = base + i, base + (i + 1) % 8
            src_list += [a, b]
            dst_list += [b, a]
    edge_index = jnp.array([src_list, dst_list], dtype=jnp.int32)
    edge_weight = jax.random.uniform(k_ew, (edge_index.shape[1],), jnp.float32, 0.5, 1.5)

    # batch assignment vector (data.batch)
    batch = jnp.repeat(jnp.arange(num_graphs, dtype=jnp.int32), 8)

    a_hat = build_normalized_adjacency(edge_index, edge_weight, num_nodes)
    pool = build_pooling_matrix(batch, num_graphs)
    params = init_params(k_w, hidden_dim, embedding_dim)

    out = aggregation_network_forward(x, a_hat, pool, params)
    out = jax.block_until_ready(out)

    ref = reference_forward(x, a_hat, pool, params)
    assert out.shape == (num_graphs, embedding_dim)
    # Tolerance relaxed vs. 1e-5 because MXU operands are bf16 (f32 accumulation).
    assert jnp.allclose(out, ref, atol=3e-2, rtol=3e-2), (out, ref)

    print("KERNEL_OK")
</pallas_src>

<mosaic_0001>
module attributes {stable_mosaic.version = 11 : i64} {
  func.func @_agg_kernel(%arg0: memref<16x16xbf16, #tpu.memory_space<vmem>>, %arg1: memref<2x16xbf16, #tpu.memory_space<vmem>>, %arg2: memref<8x32xf32, #tpu.memory_space<vmem>>, %arg3: memref<32x2xbf16, #tpu.memory_space<vmem>>, %arg4: memref<2x2xf32, #tpu.memory_space<vmem>>) attributes {dimension_semantics = [], scalar_prefetch = 0 : i64, scratch_operands = 0 : i64, tpu.core_type = #tpu.core_type<tc>} {
    %c0 = arith.constant 0 : index
    %c0_0 = arith.constant 0 : index
    %0 = vector.load %arg0[%c0, %c0_0] : memref<16x16xbf16, #tpu.memory_space<vmem>>, vector<16x16xbf16>
    %c0_1 = arith.constant 0 : index
    %c0_2 = arith.constant 0 : index
    %1 = vector.load %arg2[%c0_1, %c0_2] : memref<8x32xf32, #tpu.memory_space<vmem>>, vector<1x32xf32>
    %c1 = arith.constant 1 : index
    %c0_3 = arith.constant 0 : index
    %2 = vector.load %arg2[%c1, %c0_3] : memref<8x32xf32, #tpu.memory_space<vmem>>, vector<1x32xf32>
    %c2 = arith.constant 2 : index
    %c0_4 = arith.constant 0 : index
    %3 = vector.load %arg2[%c2, %c0_4] : memref<8x32xf32, #tpu.memory_space<vmem>>, vector<1x2xf32>
    %c3 = arith.constant 3 : index
    %c0_5 = arith.constant 0 : index
    %4 = vector.load %arg2[%c3, %c0_5] : memref<8x32xf32, #tpu.memory_space<vmem>>, vector<1x16xf32>
    %5 = arith.extf %0 : vector<16x16xbf16> to vector<16x16xf32>
    %6 = vector.broadcast %4 : vector<1x16xf32> to vector<16x16xf32>
    %7 = arith.mulf %5, %6 : vector<16x16xf32>
    %cst = arith.constant dense<0.000000e+00> : vector<16xf32>
    %8 = vector.multi_reduction <add>, %7, %cst [1] : vector<16x16xf32> to vector<16xf32>
    %9 = vector.shape_cast %8 : vector<16xf32> to vector<16x1xf32>
    %10 = vector.broadcast %9 : vector<16x1xf32> to vector<16x32xf32>
    %11 = vector.broadcast %1 : vector<1x32xf32> to vector<16x32xf32>
    %12 = arith.mulf %10, %11 : vector<16x32xf32>
    %13 = vector.broadcast %2 : vector<1x32xf32> to vector<16x32xf32>
    %14 = arith.addf %12, %13 : vector<16x32xf32>
    %cst_6 = arith.constant 0.000000e+00 : f32
    %15 = vector.broadcast %cst_6 : f32 to vector<16x32xf32>
    %16 = arith.maximumf %14, %15 : vector<16x32xf32>
    %c0_7 = arith.constant 0 : index
    %c0_8 = arith.constant 0 : index
    %17 = vector.load %arg1[%c0_7, %c0_8] : memref<2x16xbf16, #tpu.memory_space<vmem>>, vector<2x16xbf16>
    %cst_9 = arith.constant dense<0.000000e+00> : vector<2x16xf32>
    %18 = tpu.matmul %17, %0, %cst_9 {dimension_numbers = #tpu.dot_dimension_numbers<[1], [0], [0], [1], [0, 0, 1, 1], [], []>} : vector<2x16xbf16>, vector<16x16xbf16>, vector<2x16xf32> -> vector<2x16xf32>
    %19 = arith.truncf %18 : vector<2x16xf32> to vector<2x16xbf16>
    %20 = arith.truncf %16 : vector<16x32xf32> to vector<16x32xbf16>
    %cst_10 = arith.constant dense<0.000000e+00> : vector<2x32xf32>
    %21 = tpu.matmul %19, %20, %cst_10 {dimension_numbers = #tpu.dot_dimension_numbers<[1], [0], [0], [1], [0, 0, 1, 1], [], []>} : vector<2x16xbf16>, vector<16x32xbf16>, vector<2x32xf32> -> vector<2x32xf32>
    %22 = arith.truncf %21 : vector<2x32xf32> to vector<2x32xbf16>
    %c0_11 = arith.constant 0 : index
    %c0_12 = arith.constant 0 : index
    %23 = vector.load %arg3[%c0_11, %c0_12] : memref<32x2xbf16, #tpu.memory_space<vmem>>, vector<32x2xbf16>
    %cst_13 = arith.constant dense<0.000000e+00> : vector<2x2xf32>
    %24 = tpu.matmul %22, %23, %cst_13 {dimension_numbers = #tpu.dot_dimension_numbers<[1], [0], [0], [1], [0, 0, 1, 1], [], []>} : vector<2x32xbf16>, vector<32x2xbf16>, vector<2x2xf32> -> vector<2x2xf32>
    %25 = vector.broadcast %3 : vector<1x2xf32> to vector<2x2xf32>
    %26 = arith.addf %24, %25 : vector<2x2xf32>
    %c0_14 = arith.constant 0 : index
    %c0_15 = arith.constant 0 : index
    %27 = vector.load %arg4[%c0_14, %c0_15] : memref<2x2xf32, #tpu.memory_space<vmem>>, vector<2x2xf32>
    tpu.vector_store %arg4[%c0_14, %c0_15], %26 {strides = array<i32>} : memref<2x2xf32, #tpu.memory_space<vmem>>, vector<2x2xf32>,
    return
  }
}

</mosaic_0001>

<llo_original>
// kernel: tpu_custom_call.1
$region0: #{tpu_custom_call.1}
  #allocation0 [shape = 'u32[]', space=smem, size = 0x4, offset = 0x4, fixed_abs, tag = 'smem constant byte address 0x4 - core index']
  #allocation1 [shape = 'u32[144,128]{1,0:T(1,128)}', space=vmem, size = 0x12000, scoped, tag = 'internal scratch']
  %s0 = inlined_call_operand.vmem [shape: bf16[16,16], index: 0, kind: input, shape index: {}]
  %s1 = inlined_call_operand.vmem [shape: bf16[2,16], index: 1, kind: input, shape index: {}]
  %s2 = inlined_call_operand.vmem [shape: f32[8,32], index: 2, kind: input, shape index: {}]
  %s3 = inlined_call_operand.vmem [shape: bf16[32,2], index: 3, kind: input, shape index: {}]
  %s4 = inlined_call_operand.hbm [shape: f32[2,2], index: 4, kind: output, shape index: {}]
  %s5 = sld [smem:[#allocation0]]
  $region26: #{tpu_custom_call.1} parent=0
    _
  %s7 = ssub.s32 1, %s5
  %s8 = scalar_select 0, %s7, %s5
  $region1: #{tpu_custom_call.1} parent=0
    #allocation2 [shape = 'u8[1024]{0}', space=vmem, size = 0x400, scoped, tag = 'output window, operand 0, single buffered']
    #allocation3 [shape = 's32[1]{0}', space=sflag, size = 0x4, scoped, tag = 'scoped memory for tpu_custom_call.1']
    %9 = vsyncpa [#allocation3], 0
    // Predicated region
    $region2: #{tpu_custom_call.1} parent=1 // pred_check
      _
    $region3: #{tpu_custom_call.1} parent=1 // pred_check_branch
      %11 = sbr.rel (0) target = $region5
    $region4: #{tpu_custom_call.1} parent=1 // pred_region
      _
    $region5: #{tpu_custom_call.1} parent=1 // pred_fallthru
      _
    // Predicated region
    $region6: #{tpu_custom_call.1} parent=1 // pred_check
      _
    $region7: #{tpu_custom_call.1} parent=1 // pred_check_branch
      %13 = sbr.rel (0) target = $region9
    $region8: #{tpu_custom_call.1} parent=1 // pred_region
      _
    $region9: #{tpu_custom_call.1} parent=1 // pred_fallthru
      _
    // Predicated region
    $region10: #{tpu_custom_call.1} parent=1 // pred_check
      _
    $region11: #{tpu_custom_call.1} parent=1 // pred_check_branch
      %15 = sbr.rel (0) target = $region13
    $region12: #{tpu_custom_call.1} parent=1 // pred_region
      _
    $region13: #{tpu_custom_call.1} parent=1 // pred_fallthru
      _
    // Predicated region
    $region14: #{tpu_custom_call.1} parent=1 // pred_check
      _
    $region15: #{tpu_custom_call.1} parent=1 // pred_check_branch
      %17 = sbr.rel (0) target = $region17
    $region16: #{tpu_custom_call.1} parent=1 // pred_region
      _
    $region17: #{tpu_custom_call.1} parent=1 // pred_fallthru
      _
    %v19 = vld [vmem:[%s0] sm:$0xf]
    %v20 = vld [vmem:[%s0 + $0x4] sm:$0xf]
    %v21 = vld [vmem:[%s2] sm:$0x1]
    %v22 = vld [vmem:[%s2 + $0x1] sm:$0x1]
    %v23 = vld [vmem:[%s2 + $0x2] sm:$0x1]
    %v24 = vld [vmem:[%s2 + $0x3] sm:$0x1]
    %v25 = vunpack.c.l.bf16 %v19
    %v26 = vunpack.c.l.bf16 %v20
    %v27 = vlaneseq
    %v28 = vshrl.u32 %v27, 7
    %v29 = vsub.s32 0, %v28
    %v30 = vrot.slane %v24, %v29
    %v31 = vmul.f32 %v25, %v30
    %v32 = vmul.f32 %v26, %v30
    %vm33 = vcmask 130048
    %v34 = vsel %vm33, %v31, 0.0
    %35 = vadd.xlane.f32.xlu0 %v34
    %v36 = vpop.xlane.xlu0 %35
    %v37 = vsel %vm33, %v32, 0.0
    %38 = vadd.xlane.f32.xlu0 %v37
    %v39 = vpop.xlane.xlu0 %38
    %v40 = vlaneseq
    %v41 = vshrl.u32 %v40, 7
    %v42 = vsub.s32 0, %v41
    %v43 = vrot.slane %v21, %v42
    %v44 = vmul.f32 %v36, %v43
    %v45 = vmul.f32 %v39, %v43
    %v46 = vlaneseq
    %v47 = vshrl.u32 %v46, 7
    %v48 = vsub.s32 0, %v47
    %v49 = vrot.slane %v22, %v48
    %v50 = vadd.f32 %v44, %v49
    %v51 = vadd.f32 %v45, %v49
    %v52 = vmax.f32 %v50, 0.0
    %v53 = vmax.f32 %v51, 0.0
    %v54 = vld [vmem:[%s1] sm:$0x1]
    %v57 = vunpack.c.l.b16 %v19
    %v58 = vunpack.c.l.b16 %v20
    %v59 = vpack.c.b16 %v58, %v57
    %v62 = vsel %vm33, %v54, 0
    %64 = vmatprep.subr.bf16.mxu0 0
    %65 = vmatpush1.bf16.msra.mxu0 %v59
    %66 = vmatprep.subr.bf16.mxu0 0
    %67 = vmatpush1.bf16.msra.mxu0 0
    %68 = vmatprep.subr.bf16.mxu0 0
    %69 = vmatpush1.bf16.msra.mxu0 0
    %70 = vmatprep.subr.bf16.mxu0 0
    %71 = vmatpush1.bf16.msra.mxu0 0
    %72 = vmatprep.subr.bf16.mxu0 0
    %73 = vmatpush1.bf16.msra.mxu0 0
    %74 = vmatprep.subr.bf16.mxu0 0
    %75 = vmatpush1.bf16.msra.mxu0 0
    %76 = vmatprep.subr.bf16.mxu0 0
    %77 = vmatpush1.bf16.msra.mxu0 0
    %78 = vmatprep.subr.bf16.mxu0 0
    %79 = vmatpush1.bf16.msra.mxu0 0
    %80 = vmatprep.subr.bf16.mxu0 0
    %81 = vmatpush1.bf16.msra.mxu0 0
    %82 = vmatprep.subr.bf16.mxu0 0
    %83 = vmatpush1.bf16.msra.mxu0 0
    %84 = vmatprep.subr.bf16.mxu0 0
    %85 = vmatpush1.bf16.msra.mxu0 0
    %86 = vmatprep.subr.bf16.mxu0 0
    %87 = vmatpush1.bf16.msra.mxu0 0
    %88 = vmatprep.subr.bf16.mxu0 0
    %89 = vmatpush1.bf16.msra.mxu0 0
    %90 = vmatprep.subr.bf16.mxu0 0
    %91 = vmatpush1.bf16.msra.mxu0 0
    %92 = vmatprep.subr.bf16.mxu0 0
    %93 = vmatpush1.bf16.msra.mxu0 0
    %94 = vmatprep.subr.bf16.mxu0 0
    %95 = vmatpush1.bf16.msra.mxu0 0
    %96 = vmatprep.mubr.bf16.mxu0 0
    %97 = vmatmul.mubr.bf16.gmra.mrb[0].mxu0 %v62
    %v98 = vpop.f32.mrb[0].mxu0
    %v99 = vadd.f32 0.0, %v98
    %v100 = vpop.f32.mrb[0].mxu0
    %v101 = vpop.f32.mrb[0].mxu0
    %v102 = vpop.f32.mrb[0].mxu0
    %103 = vdwg.mxu0
    %v104 = vpack.c.bf16 %v99, %v99
    %v105 = vpack.c.bf16 %v53, %v52
    %v107 = vsel %vm33, %v104, 0
    %109 = vmatprep.subr.bf16.mxu0 0
    %110 = vmatpush1.bf16.msra.mxu0 %v105
    %111 = vmatprep.subr.bf16.mxu0 0
    %112 = vmatpush1.bf16.msra.mxu0 0
    %113 = vmatprep.subr.bf16.mxu0 0
    %114 = vmatpush1.bf16.msra.mxu0 0
    %115 = vmatprep.subr.bf16.mxu0 0
    %116 = vmatpush1.bf16.msra.mxu0 0
    %117 = vmatprep.subr.bf16.mxu0 0
    %118 = vmatpush1.bf16.msra.mxu0 0
    %119 = vmatprep.subr.bf16.mxu0 0
    %120 = vmatpush1.bf16.msra.mxu0 0
    %121 = vmatprep.subr.bf16.mxu0 0
    %122 = vmatpush1.bf16.msra.mxu0 0
    %123 = vmatprep.subr.bf16.mxu0 0
    %124 = vmatpush1.bf16.msra.mxu0 0
    %125 = vmatprep.subr.bf16.mxu0 0
    %126 = vmatpush1.bf16.msra.mxu0 0
    %127 = vmatprep.subr.bf16.mxu0 0
    %128 = vmatpush1.bf16.msra.mxu0 0
    %129 = vmatprep.subr.bf16.mxu0 0
    %130 = vmatpush1.bf16.msra.mxu0 0
    %131 = vmatprep.subr.bf16.mxu0 0
    %132 = vmatpush1.bf16.msra.mxu0 0
    %133 = vmatprep.subr.bf16.mxu0 0
    %134 = vmatpush1.bf16.msra.mxu0 0
    %135 = vmatprep.subr.bf16.mxu0 0
    %136 = vmatpush1.bf16.msra.mxu0 0
    %137 = vmatprep.subr.bf16.mxu0 0
    %138 = vmatpush1.bf16.msra.mxu0 0
    %139 = vmatprep.subr.bf16.mxu0 0
    %140 = vmatpush1.bf16.msra.mxu0 0
    %141 = vmatprep.mubr.bf16.mxu0 0
    %142 = vmatmul.mubr.bf16.gmra.mrb[0].mxu0 %v107
    %v143 = vpop.f32.mrb[0].mxu0
    %v144 = vadd.f32 0.0, %v143
    %v145 = vpop.f32.mrb[0].mxu0
    %v146 = vpop.f32.mrb[0].mxu0
    %v147 = vpop.f32.mrb[0].mxu0
    %148 = vdwg.mxu0
    %v149 = vpack.c.bf16 %v144, %v144
    %v150 = vld [vmem:[%s3] sm:$0xf]
    %v151 = vld [vmem:[%s3 + $0x4] sm:$0xf]
    %v152 = vld [vmem:[%s3 + $0x8] sm:$0xf]
    %v153 = vld [vmem:[%s3 + $0xc] sm:$0xf]
    %v154 = vlaneseq
    %v155 = vshrl.u32 %v154, 7
    %v156 = vsub.s32 0, %v155
    %v157 = vrot.slane %v23, %v156
    %v162 = vunpack.c.l.b16 %v150
    %v163 = vunpack.c.l.b16 %v151
    %v164 = vunpack.c.l.b16 %v152
    %v165 = vunpack.c.l.b16 %v153
    %v166 = vpack.c.b16 %v163, %v162
    %v167 = vpack.c.b16 %v165, %v164
    %vm170 = vcmask 261120
    %v172 = vsel %vm170, %v149, 0
    %174 = vmatprep.subr.bf16.mxu0 0
    %175 = vmatpush1.bf16.msra.mxu0 %v166
    %176 = vmatprep.subr.bf16.mxu0 0
    %177 = vmatpush1.bf16.msra.mxu0 %v167
    %178 = vmatprep.subr.bf16.mxu0 0
    %179 = vmatpush1.bf16.msra.mxu0 0
    %180 = vmatprep.subr.bf16.mxu0 0
    %181 = vmatpush1.bf16.msra.mxu0 0
    %182 = vmatprep.subr.bf16.mxu0 0
    %183 = vmatpush1.bf16.msra.mxu0 0
    %184 = vmatprep.subr.bf16.mxu0 0
    %185 = vmatpush1.bf16.msra.mxu0 0
    %186 = vmatprep.subr.bf16.mxu0 0
    %187 = vmatpush1.bf16.msra.mxu0 0
    %188 = vmatprep.subr.bf16.mxu0 0
    %189 = vmatpush1.bf16.msra.mxu0 0
    %190 = vmatprep.subr.bf16.mxu0 0
    %191 = vmatpush1.bf16.msra.mxu0 0
    %192 = vmatprep.subr.bf16.mxu0 0
    %193 = vmatpush1.bf16.msra.mxu0 0
    %194 = vmatprep.subr.bf16.mxu0 0
    %195 = vmatpush1.bf16.msra.mxu0 0
    %196 = vmatprep.subr.bf16.mxu0 0
    %197 = vmatpush1.bf16.msra.mxu0 0
    %198 = vmatprep.subr.bf16.mxu0 0
    %199 = vmatpush1.bf16.msra.mxu0 0
    %200 = vmatprep.subr.bf16.mxu0 0
    %201 = vmatpush1.bf16.msra.mxu0 0
    %202 = vmatprep.subr.bf16.mxu0 0
    %203 = vmatpush1.bf16.msra.mxu0 0
    %204 = vmatprep.subr.bf16.mxu0 0
    %205 = vmatpush1.bf16.msra.mxu0 0
    %206 = vmatprep.mubr.bf16.mxu0 0
    %207 = vmatmul.mubr.bf16.gmra.mrb[0].mxu0 %v172
    %v208 = vpop.f32.mrb[0].mxu0
    %v209 = vadd.f32 %v157, %v208
    %v210 = vpop.f32.mrb[0].mxu0
    %v211 = vpop.f32.mrb[0].mxu0
    %v212 = vpop.f32.mrb[0].mxu0
    %213 = vdwg.mxu0
    %vm214 = vcmask 9216
    %215 = vst.msk [vmem:[#allocation2] sm:$0x3] %vm214, %v209
    // Predicated region
    $region18: #{tpu_custom_call.1} parent=1 // pred_check
      _
    $region19: #{tpu_custom_call.1} parent=1 // pred_check_branch
      %217 = sbr.rel (0) target = $region21
    $region20: #{tpu_custom_call.1} parent=1 // pred_region
      %s219 = ssub.s32 32, 32
      %220 = vsyncadd [#allocation3], %s219
      %s222 = sshll.u32 [#allocation2], 4
      %s223 = int_to_ptr.vmem [resolvable:$true] %s222
      %225 = dma.vmem_to_hbm [thread:$0]  %s223, 32, %s4, [#allocation3]
    $region21: #{tpu_custom_call.1} parent=1 // pred_fallthru
      _
    // Predicated region
    $region22: #{tpu_custom_call.1} parent=1 // pred_check
      _
    $region23: #{tpu_custom_call.1} parent=1 // pred_check_branch
      %227 = sbr.rel (0) target = $region25
    $region24: #{tpu_custom_call.1} parent=1 // pred_region
      %228 = dma.done [#allocation3], 32
    $region25: #{tpu_custom_call.1} parent=1 // pred_fallthru
      _
    %229 = vsyncpa [#allocation3], 1

</llo_original>
